<compile_context>
chip_gen: v7x
topology: tpu7x:2x2x1
jax: 0.10.0
libtpu: 0.0.40
codegen_flags: <defaults>
</compile_context>

<pallas_src>
import jax
import jax.numpy as jnp
from jax.experimental import pallas as pl
from jax.experimental.pallas import tpu as pltpu

# Layer widths of SigmoidNet: nfeatures -> 64 -> 32 -> 24 -> 12 -> 8 -> 1
LAYER_SIZES = [64, 32, 24, 12, 8, 1]

# Batch-tile size for large batches.  Multiple of 128 so the lane-dense
# (1, TB) output blocks satisfy the (8,128) tiling rule when there are
# multiple tiles, and >=512 rows to amortize the ~0.35us/step pipeline
# overhead (kernel is HBM-read-bound).
_DEFAULT_BLOCK_BATCH = 512


def _round_up(n, m):
    return ((n + m - 1) // m) * m


def _sigmoid(x):
    # sigmoid(x) == 0.5 * tanh(0.5 * x) + 0.5
    # tanh lowers to the EUP (transcendental) slot, which is idle in this
    # kernel, and avoids the inf intermediate of 1/(1+exp(-x)).
    return 0.5 * jnp.tanh(0.5 * x) + 0.5


def sigmoidnet_kernel(x_ref,
                      w1, b1, w2, b2, w3, b3, w4, b4, w5, b5, w6, b6,
                      o_ref):
    h = x_ref[...]

    # fc1 -> relu -> sigmoid
    h = jnp.dot(h, w1[...], preferred_element_type=jnp.float32) + b1[...]
    h = _sigmoid(jnp.maximum(h, 0.0))
    # fc2..fc5 -> sigmoid
    h = _sigmoid(jnp.dot(h, w2[...], preferred_element_type=jnp.float32) + b2[...])
    h = _sigmoid(jnp.dot(h, w3[...], preferred_element_type=jnp.float32) + b3[...])
    h = _sigmoid(jnp.dot(h, w4[...], preferred_element_type=jnp.float32) + b4[...])
    h = _sigmoid(jnp.dot(h, w5[...], preferred_element_type=jnp.float32) + b5[...])
    # fc6 -> sigmoid; write lane-dense: transpose the (TB,1) column to (1,TB).
    z = jnp.dot(h, w6[...], preferred_element_type=jnp.float32) + b6[...]
    o_ref[...] = _sigmoid(z).T


def init_params(nfeatures, key):
    """Xavier-uniform weights, bias = 0.01 (mirrors init_weights + post_init).

    Weights are stored transposed as (in_features, out_features) so the
    kernel computes plain x @ W + b.
    """
    params = []
    fan_in = nfeatures
    for fan_out in LAYER_SIZES:
        key, sub = jax.random.split(key)
        limit = jnp.sqrt(6.0 / (fan_in + fan_out))
        w = jax.random.uniform(sub, (fan_in, fan_out), jnp.float32,
                               minval=-limit, maxval=limit)
        b = jnp.full((1, fan_out), 0.01, jnp.float32)
        params.append((w, b))
        fan_in = fan_out
    return params


def sigmoidnet_forward(x, params, *, block_batch=_DEFAULT_BLOCK_BATCH):
    batch, nfeatures = x.shape

    # Small batches: one tile rounded up to the sublane multiple (8).
    # Large batches: fixed block_batch-row tiles (multiple of 128).
    if batch <= block_batch:
        tb = _round_up(batch, 8)
    else:
        tb = block_batch
    padded = _round_up(batch, tb)
    num_tiles = padded // tb

    x_p = x if padded == batch else jnp.pad(x, ((0, padded - batch), (0, 0)))

    flat = []
    for w, b in params:
        flat.extend([w, b])

    # x tiled along batch; every weight/bias is a whole-array block that
    # stays VMEM-resident across all grid steps.
    in_specs = [pl.BlockSpec((tb, nfeatures), lambda i: (i, 0))]
    for arr in flat:
        in_specs.append(pl.BlockSpec(arr.shape, lambda i: (0, 0)))

    out = pl.pallas_call(
        sigmoidnet_kernel,
        out_shape=jax.ShapeDtypeStruct((1, padded), jnp.float32),
        grid_spec=pltpu.PrefetchScalarGridSpec(
            num_scalar_prefetch=0,
            grid=(num_tiles,),
            in_specs=in_specs,
            # Lane-dense output row slabs.
            out_specs=pl.BlockSpec((1, tb), lambda i: (0, i)),
        ),
        compiler_params=pltpu.CompilerParams(
            dimension_semantics=("parallel",)),
    )(x_p, *flat)

    return out[0, :batch].reshape(batch, 1)


def reference_forward(x, params):
    h = x
    for i, (w, b) in enumerate(params):
        h = h @ w + b
        if i == 0:
            h = jnp.maximum(h, 0.0)
        h = jax.nn.sigmoid(h)
    return h


if __name__ == "__main__":
    key = jax.random.PRNGKey(0)
    k_x, k_x2, k_p = jax.random.split(key, 3)

    batch, nfeatures = 16, 16
    params = init_params(nfeatures, k_p)

    x = jax.random.normal(k_x, (batch, nfeatures), jnp.float32)
    y = jax.block_until_ready(sigmoidnet_forward(x, params))
    y_ref = reference_forward(x, params)
    assert y.shape == (batch, 1)
    assert jnp.allclose(y, y_ref, atol=1e-5, rtol=1e-5)

    # Ragged batch (not a multiple of 8) exercises the padding path.
    x2 = jax.random.normal(k_x2, (13, nfeatures), jnp.float32)
    y2 = jax.block_until_ready(sigmoidnet_forward(x2, params))
    y2_ref = reference_forward(x2, params)
    assert y2.shape == (13, 1)
    assert jnp.allclose(y2, y2_ref, atol=1e-5, rtol=1e-5)

    print("KERNEL_OK")
</pallas_src>

<mosaic_0001>
module attributes {stable_mosaic.version = 11 : i64} {
  func.func @sigmoidnet_kernel(%arg0: i32, %arg1: memref<16x16xf32, #tpu.memory_space<vmem>>, %arg2: memref<16x64xf32, #tpu.memory_space<vmem>>, %arg3: memref<1x64xf32, #tpu.memory_space<vmem>>, %arg4: memref<64x32xf32, #tpu.memory_space<vmem>>, %arg5: memref<1x32xf32, #tpu.memory_space<vmem>>, %arg6: memref<32x24xf32, #tpu.memory_space<vmem>>, %arg7: memref<1x24xf32, #tpu.memory_space<vmem>>, %arg8: memref<24x12xf32, #tpu.memory_space<vmem>>, %arg9: memref<1x12xf32, #tpu.memory_space<vmem>>, %arg10: memref<12x8xf32, #tpu.memory_space<vmem>>, %arg11: memref<1x8xf32, #tpu.memory_space<vmem>>, %arg12: memref<8x1xf32, #tpu.memory_space<vmem>>, %arg13: memref<1x1xf32, #tpu.memory_space<vmem>>, %arg14: memref<1x16xf32, #tpu.memory_space<vmem>>) attributes {dimension_semantics = [#tpu.dimension_semantics<parallel>], iteration_bounds = array<i64: 1>, scalar_prefetch = 0 : i64, scratch_operands = 0 : i64, tpu.core_type = #tpu.core_type<tc>, window_params = [{transform_indices = @transform_0, window_bounds = array<i64: 16, 16>}, {pipeline_mode = #tpu.pipeline_mode<synchronous>, transform_indices = @transform_1, window_bounds = array<i64: 16, 64>}, {pipeline_mode = #tpu.pipeline_mode<synchronous>, transform_indices = @transform_2, window_bounds = array<i64: 1, 64>}, {pipeline_mode = #tpu.pipeline_mode<synchronous>, transform_indices = @transform_3, window_bounds = array<i64: 64, 32>}, {pipeline_mode = #tpu.pipeline_mode<synchronous>, transform_indices = @transform_4, window_bounds = array<i64: 1, 32>}, {pipeline_mode = #tpu.pipeline_mode<synchronous>, transform_indices = @transform_5, window_bounds = array<i64: 32, 24>}, {pipeline_mode = #tpu.pipeline_mode<synchronous>, transform_indices = @transform_6, window_bounds = array<i64: 1, 24>}, {pipeline_mode = #tpu.pipeline_mode<synchronous>, transform_indices = @transform_7, window_bounds = array<i64: 24, 12>}, {pipeline_mode = #tpu.pipeline_mode<synchronous>, transform_indices = @transform_8, window_bounds = array<i64: 1, 12>}, {pipeline_mode = #tpu.pipeline_mode<synchronous>, transform_indices = @transform_9, window_bounds = array<i64: 12, 8>}, {pipeline_mode = #tpu.pipeline_mode<synchronous>, transform_indices = @transform_10, window_bounds = array<i64: 1, 8>}, {pipeline_mode = #tpu.pipeline_mode<synchronous>, transform_indices = @transform_11, window_bounds = array<i64: 8, 1>}, {pipeline_mode = #tpu.pipeline_mode<synchronous>, transform_indices = @transform_12, window_bounds = array<i64: 1, 1>}, {transform_indices = @transform_13, window_bounds = array<i64: 1, 16>}]} {
    %c0 = arith.constant 0 : index
    %c0_0 = arith.constant 0 : index
    %0 = vector.load %arg1[%c0, %c0_0] : memref<16x16xf32, #tpu.memory_space<vmem>>, vector<16x16xf32>
    %c0_1 = arith.constant 0 : index
    %c0_2 = arith.constant 0 : index
    %1 = vector.load %arg2[%c0_1, %c0_2] : memref<16x64xf32, #tpu.memory_space<vmem>>, vector<16x64xf32>
    %cst = arith.constant dense<0.000000e+00> : vector<16x64xf32>
    %2 = tpu.matmul %0, %1, %cst {dimension_numbers = #tpu.dot_dimension_numbers<[1], [0], [0], [1], [0, 0, 1, 1], [], []>} : vector<16x16xf32>, vector<16x64xf32>, vector<16x64xf32> -> vector<16x64xf32>
    %c0_3 = arith.constant 0 : index
    %c0_4 = arith.constant 0 : index
    %3 = vector.load %arg3[%c0_3, %c0_4] : memref<1x64xf32, #tpu.memory_space<vmem>>, vector<1x64xf32>
    %4 = vector.broadcast %3 : vector<1x64xf32> to vector<16x64xf32>
    %5 = arith.addf %2, %4 : vector<16x64xf32>
    %cst_5 = arith.constant 0.000000e+00 : f32
    %6 = vector.broadcast %cst_5 : f32 to vector<16x64xf32>
    %7 = arith.maximumf %5, %6 : vector<16x64xf32>
    %cst_6 = arith.constant 5.000000e-01 : f32
    %8 = vector.broadcast %cst_6 : f32 to vector<16x64xf32>
    %9 = arith.mulf %8, %7 : vector<16x64xf32>
    %10 = math.tanh %9 : vector<16x64xf32>
    %cst_7 = arith.constant 5.000000e-01 : f32
    %11 = vector.broadcast %cst_7 : f32 to vector<16x64xf32>
    %12 = arith.mulf %11, %10 : vector<16x64xf32>
    %cst_8 = arith.constant 5.000000e-01 : f32
    %13 = vector.broadcast %cst_8 : f32 to vector<16x64xf32>
    %14 = arith.addf %12, %13 : vector<16x64xf32>
    %c0_9 = arith.constant 0 : index
    %c0_10 = arith.constant 0 : index
    %15 = vector.load %arg4[%c0_9, %c0_10] : memref<64x32xf32, #tpu.memory_space<vmem>>, vector<64x32xf32>
    %cst_11 = arith.constant dense<0.000000e+00> : vector<16x32xf32>
    %16 = tpu.matmul %14, %15, %cst_11 {dimension_numbers = #tpu.dot_dimension_numbers<[1], [0], [0], [1], [0, 0, 1, 1], [], []>} : vector<16x64xf32>, vector<64x32xf32>, vector<16x32xf32> -> vector<16x32xf32>
    %c0_12 = arith.constant 0 : index
    %c0_13 = arith.constant 0 : index
    %17 = vector.load %arg5[%c0_12, %c0_13] : memref<1x32xf32, #tpu.memory_space<vmem>>, vector<1x32xf32>
    %18 = vector.broadcast %17 : vector<1x32xf32> to vector<16x32xf32>
    %19 = arith.addf %16, %18 : vector<16x32xf32>
    %cst_14 = arith.constant 5.000000e-01 : f32
    %20 = vector.broadcast %cst_14 : f32 to vector<16x32xf32>
    %21 = arith.mulf %20, %19 : vector<16x32xf32>
    %22 = math.tanh %21 : vector<16x32xf32>
    %cst_15 = arith.constant 5.000000e-01 : f32
    %23 = vector.broadcast %cst_15 : f32 to vector<16x32xf32>
    %24 = arith.mulf %23, %22 : vector<16x32xf32>
    %cst_16 = arith.constant 5.000000e-01 : f32
    %25 = vector.broadcast %cst_16 : f32 to vector<16x32xf32>
    %26 = arith.addf %24, %25 : vector<16x32xf32>
    %c0_17 = arith.constant 0 : index
    %c0_18 = arith.constant 0 : index
    %27 = vector.load %arg6[%c0_17, %c0_18] : memref<32x24xf32, #tpu.memory_space<vmem>>, vector<32x24xf32>
    %cst_19 = arith.constant dense<0.000000e+00> : vector<16x24xf32>
    %28 = tpu.matmul %26, %27, %cst_19 {dimension_numbers = #tpu.dot_dimension_numbers<[1], [0], [0], [1], [0, 0, 1, 1], [], []>} : vector<16x32xf32>, vector<32x24xf32>, vector<16x24xf32> -> vector<16x24xf32>
    %c0_20 = arith.constant 0 : index
    %c0_21 = arith.constant 0 : index
    %29 = vector.load %arg7[%c0_20, %c0_21] : memref<1x24xf32, #tpu.memory_space<vmem>>, vector<1x24xf32>
    %30 = vector.broadcast %29 : vector<1x24xf32> to vector<16x24xf32>
    %31 = arith.addf %28, %30 : vector<16x24xf32>
    %cst_22 = arith.constant 5.000000e-01 : f32
    %32 = vector.broadcast %cst_22 : f32 to vector<16x24xf32>
    %33 = arith.mulf %32, %31 : vector<16x24xf32>
    %34 = math.tanh %33 : vector<16x24xf32>
    %cst_23 = arith.constant 5.000000e-01 : f32
    %35 = vector.broadcast %cst_23 : f32 to vector<16x24xf32>
    %36 = arith.mulf %35, %34 : vector<16x24xf32>
    %cst_24 = arith.constant 5.000000e-01 : f32
    %37 = vector.broadcast %cst_24 : f32 to vector<16x24xf32>
    %38 = arith.addf %36, %37 : vector<16x24xf32>
    %c0_25 = arith.constant 0 : index
    %c0_26 = arith.constant 0 : index
    %39 = vector.load %arg8[%c0_25, %c0_26] : memref<24x12xf32, #tpu.memory_space<vmem>>, vector<24x12xf32>
    %cst_27 = arith.constant dense<0.000000e+00> : vector<16x12xf32>
    %40 = tpu.matmul %38, %39, %cst_27 {dimension_numbers = #tpu.dot_dimension_numbers<[1], [0], [0], [1], [0, 0, 1, 1], [], []>} : vector<16x24xf32>, vector<24x12xf32>, vector<16x12xf32> -> vector<16x12xf32>
    %c0_28 = arith.constant 0 : index
    %c0_29 = arith.constant 0 : index
    %41 = vector.load %arg9[%c0_28, %c0_29] : memref<1x12xf32, #tpu.memory_space<vmem>>, vector<1x12xf32>
    %42 = vector.broadcast %41 : vector<1x12xf32> to vector<16x12xf32>
    %43 = arith.addf %40, %42 : vector<16x12xf32>
    %cst_30 = arith.constant 5.000000e-01 : f32
    %44 = vector.broadcast %cst_30 : f32 to vector<16x12xf32>
    %45 = arith.mulf %44, %43 : vector<16x12xf32>
    %46 = math.tanh %45 : vector<16x12xf32>
    %cst_31 = arith.constant 5.000000e-01 : f32
    %47 = vector.broadcast %cst_31 : f32 to vector<16x12xf32>
    %48 = arith.mulf %47, %46 : vector<16x12xf32>
    %cst_32 = arith.constant 5.000000e-01 : f32
    %49 = vector.broadcast %cst_32 : f32 to vector<16x12xf32>
    %50 = arith.addf %48, %49 : vector<16x12xf32>
    %c0_33 = arith.constant 0 : index
    %c0_34 = arith.constant 0 : index
    %51 = vector.load %arg10[%c0_33, %c0_34] : memref<12x8xf32, #tpu.memory_space<vmem>>, vector<12x8xf32>
    %cst_35 = arith.constant dense<0.000000e+00> : vector<16x8xf32>
    %52 = tpu.matmul %50, %51, %cst_35 {dimension_numbers = #tpu.dot_dimension_numbers<[1], [0], [0], [1], [0, 0, 1, 1], [], []>} : vector<16x12xf32>, vector<12x8xf32>, vector<16x8xf32> -> vector<16x8xf32>
    %c0_36 = arith.constant 0 : index
    %c0_37 = arith.constant 0 : index
    %53 = vector.load %arg11[%c0_36, %c0_37] : memref<1x8xf32, #tpu.memory_space<vmem>>, vector<1x8xf32>
    %54 = vector.broadcast %53 : vector<1x8xf32> to vector<16x8xf32>
    %55 = arith.addf %52, %54 : vector<16x8xf32>
    %cst_38 = arith.constant 5.000000e-01 : f32
    %56 = vector.broadcast %cst_38 : f32 to vector<16x8xf32>
    %57 = arith.mulf %56, %55 : vector<16x8xf32>
    %58 = math.tanh %57 : vector<16x8xf32>
    %cst_39 = arith.constant 5.000000e-01 : f32
    %59 = vector.broadcast %cst_39 : f32 to vector<16x8xf32>
    %60 = arith.mulf %59, %58 : vector<16x8xf32>
    %cst_40 = arith.constant 5.000000e-01 : f32
    %61 = vector.broadcast %cst_40 : f32 to vector<16x8xf32>
    %62 = arith.addf %60, %61 : vector<16x8xf32>
    %c0_41 = arith.constant 0 : index
    %c0_42 = arith.constant 0 : index
    %63 = vector.load %arg12[%c0_41, %c0_42] : memref<8x1xf32, #tpu.memory_space<vmem>>, vector<8x1xf32>
    %cst_43 = arith.constant dense<0.000000e+00> : vector<16x1xf32>
    %64 = tpu.matmul %62, %63, %cst_43 {dimension_numbers = #tpu.dot_dimension_numbers<[1], [0], [0], [1], [0, 0, 1, 1], [], []>} : vector<16x8xf32>, vector<8x1xf32>, vector<16x1xf32> -> vector<16x1xf32>
    %c0_44 = arith.constant 0 : index
    %c0_45 = arith.constant 0 : index
    %65 = vector.load %arg13[%c0_44, %c0_45] : memref<1x1xf32, #tpu.memory_space<vmem>>, vector<1x1xf32>
    %66 = vector.broadcast %65 : vector<1x1xf32> to vector<16x1xf32>
    %67 = arith.addf %64, %66 : vector<16x1xf32>
    %cst_46 = arith.constant 5.000000e-01 : f32
    %68 = vector.broadcast %cst_46 : f32 to vector<16x1xf32>
    %69 = arith.mulf %68, %67 : vector<16x1xf32>
    %70 = math.tanh %69 : vector<16x1xf32>
    %cst_47 = arith.constant 5.000000e-01 : f32
    %71 = vector.broadcast %cst_47 : f32 to vector<16x1xf32>
    %72 = arith.mulf %71, %70 : vector<16x1xf32>
    %cst_48 = arith.constant 5.000000e-01 : f32
    %73 = vector.broadcast %cst_48 : f32 to vector<16x1xf32>
    %74 = arith.addf %72, %73 : vector<16x1xf32>
    %75 = tpu.transpose %74, [1, 0] : vector<16x1xf32> -> vector<1x16xf32>
    %c0_49 = arith.constant 0 : index
    %c0_50 = arith.constant 0 : index
    %76 = vector.load %arg14[%c0_49, %c0_50] : memref<1x16xf32, #tpu.memory_space<vmem>>, vector<1x16xf32>
    tpu.vector_store %arg14[%c0_49, %c0_50], %75 {strides = array<i32>} : memref<1x16xf32, #tpu.memory_space<vmem>>, vector<1x16xf32>,
    return
  }
  func.func @transform_0(%arg0: i32) -> (i32, i32) {
    %c0_i32 = arith.constant 0 : i32
    %c0_i32_0 = arith.constant 0 : i32
    return %arg0, %c0_i32 : i32, i32
  }
  func.func @transform_1(%arg0: i32) -> (i32, i32) {
    %c0_i32 = arith.constant 0 : i32
    %c0_i32_0 = arith.constant 0 : i32
    %c0_i32_1 = arith.constant 0 : i32
    return %c0_i32, %c0_i32_0 : i32, i32
  }
  func.func @transform_2(%arg0: i32) -> (i32, i32) {
    %c0_i32 = arith.constant 0 : i32
    %c0_i32_0 = arith.constant 0 : i32
    %c0_i32_1 = arith.constant 0 : i32
    return %c0_i32, %c0_i32_0 : i32, i32
  }
  func.func @transform_3(%arg0: i32) -> (i32, i32) {
    %c0_i32 = arith.constant 0 : i32
    %c0_i32_0 = arith.constant 0 : i32
    %c0_i32_1 = arith.constant 0 : i32
    return %c0_i32, %c0_i32_0 : i32, i32
  }
  func.func @transform_4(%arg0: i32) -> (i32, i32) {
    %c0_i32 = arith.constant 0 : i32
    %c0_i32_0 = arith.constant 0 : i32
    %c0_i32_1 = arith.constant 0 : i32
    return %c0_i32, %c0_i32_0 : i32, i32
  }
  func.func @transform_5(%arg0: i32) -> (i32, i32) {
    %c0_i32 = arith.constant 0 : i32
    %c0_i32_0 = arith.constant 0 : i32
    %c0_i32_1 = arith.constant 0 : i32
    return %c0_i32, %c0_i32_0 : i32, i32
  }
  func.func @transform_6(%arg0: i32) -> (i32, i32) {
    %c0_i32 = arith.constant 0 : i32
    %c0_i32_0 = arith.constant 0 : i32
    %c0_i32_1 = arith.constant 0 : i32
    return %c0_i32, %c0_i32_0 : i32, i32
  }
  func.func @transform_7(%arg0: i32) -> (i32, i32) {
    %c0_i32 = arith.constant 0 : i32
    %c0_i32_0 = arith.constant 0 : i32
    %c0_i32_1 = arith.constant 0 : i32
    return %c0_i32, %c0_i32_0 : i32, i32
  }
  func.func @transform_8(%arg0: i32) -> (i32, i32) {
    %c0_i32 = arith.constant 0 : i32
    %c0_i32_0 = arith.constant 0 : i32
    %c0_i32_1 = arith.constant 0 : i32
    return %c0_i32, %c0_i32_0 : i32, i32
  }
  func.func @transform_9(%arg0: i32) -> (i32, i32) {
    %c0_i32 = arith.constant 0 : i32
    %c0_i32_0 = arith.constant 0 : i32
    %c0_i32_1 = arith.constant 0 : i32
    return %c0_i32, %c0_i32_0 : i32, i32
  }
  func.func @transform_10(%arg0: i32) -> (i32, i32) {
    %c0_i32 = arith.constant 0 : i32
    %c0_i32_0 = arith.constant 0 : i32
    %c0_i32_1 = arith.constant 0 : i32
    return %c0_i32, %c0_i32_0 : i32, i32
  }
  func.func @transform_11(%arg0: i32) -> (i32, i32) {
    %c0_i32 = arith.constant 0 : i32
    %c0_i32_0 = arith.constant 0 : i32
    %c0_i32_1 = arith.constant 0 : i32
    return %c0_i32, %c0_i32_0 : i32, i32
  }
  func.func @transform_12(%arg0: i32) -> (i32, i32) {
    %c0_i32 = arith.constant 0 : i32
    %c0_i32_0 = arith.constant 0 : i32
    %c0_i32_1 = arith.constant 0 : i32
    return %c0_i32, %c0_i32_0 : i32, i32
  }
  func.func @transform_13(%arg0: i32) -> (i32, i32) {
    %c0_i32 = arith.constant 0 : i32
    %c0_i32_0 = arith.constant 0 : i32
    return %c0_i32, %arg0 : i32, i32
  }
}

</mosaic_0001>

<llo_original>
// kernel: tpu_custom_call.1
$region0: #{tpu_custom_call.1}
  #allocation0 [shape = 'u32[]', space=smem, size = 0x4, offset = 0x4, fixed_abs, tag = 'smem constant byte address 0x4 - core index']
  #allocation1 [shape = 'u32[144,128]{1,0:T(1,128)}', space=vmem, size = 0x12000, scoped, tag = 'internal scratch']
  #allocation2 [shape = 'f32[1,1]{1,0:T(1,128)S(1)}', space=vmem, size = 0x200, scoped, tag = 'scoped memory for tpu_custom_call.1']
  %s0 = inlined_call_operand.vmem [shape: f32[16,16], index: 0, kind: input, shape index: {}]
  %s1 = inlined_call_operand.vmem [shape: f32[16,64], index: 1, kind: input, shape index: {}]
  %s2 = inlined_call_operand.vmem [shape: f32[1,64], index: 2, kind: input, shape index: {}]
  %s3 = inlined_call_operand.vmem [shape: f32[64,32], index: 3, kind: input, shape index: {}]
  %s4 = inlined_call_operand.vmem [shape: f32[1,32], index: 4, kind: input, shape index: {}]
  %s5 = inlined_call_operand.vmem [shape: f32[32,24], index: 5, kind: input, shape index: {}]
  %s6 = inlined_call_operand.vmem [shape: f32[1,24], index: 6, kind: input, shape index: {}]
  %s7 = inlined_call_operand.vmem [shape: f32[24,12], index: 7, kind: input, shape index: {}]
  %s8 = inlined_call_operand.vmem [shape: f32[1,12], index: 8, kind: input, shape index: {}]
  %s9 = inlined_call_operand.vmem [shape: f32[12,8], index: 9, kind: input, shape index: {}]
  %s10 = inlined_call_operand.vmem [shape: f32[1,8], index: 10, kind: input, shape index: {}]
  %s11 = inlined_call_operand.vmem [shape: f32[8,1], index: 11, kind: input, shape index: {}]
  %s12 = inlined_call_operand.<no memory space> [shape: f32[1,1], index: 12, kind: input, shape index: {}]
  %s13 = inlined_call_operand.hbm [shape: f32[1,16], index: 13, kind: output, shape index: {}]
  %s14 = sld [smem:[#allocation0]]
  $region62: #{tpu_custom_call.1} parent=0
    _
  %s16 = ssub.s32 1, %s14
  %s17 = scalar_select 0, %s16, %s14
  %v18 = vstv %s12
  %19 = vst [vmem:[#allocation2] sm:$0x1] %v18
  $region1: #{tpu_custom_call.1} parent=0
    #allocation3 [shape = 'u8[512]{0}', space=vmem, size = 0x400, scoped, tag = 'output window, operand 0, single buffered']
    #allocation4 [shape = 's32[1]{0}', space=sflag, size = 0x4, scoped, tag = 'scoped memory for tpu_custom_call.1']
    %20 = vsyncpa [#allocation4], 0
    // Predicated region
    $region2: #{tpu_custom_call.1} parent=1 // pred_check
      _
    $region3: #{tpu_custom_call.1} parent=1 // pred_check_branch
      %22 = sbr.rel (0) target = $region5
    $region4: #{tpu_custom_call.1} parent=1 // pred_region
      _
    $region5: #{tpu_custom_call.1} parent=1 // pred_fallthru
      _
    // Predicated region
    $region6: #{tpu_custom_call.1} parent=1 // pred_check
      _
    $region7: #{tpu_custom_call.1} parent=1 // pred_check_branch
      %24 = sbr.rel (0) target = $region9
    $region8: #{tpu_custom_call.1} parent=1 // pred_region
      _
    $region9: #{tpu_custom_call.1} parent=1 // pred_fallthru
      _
    // Predicated region
    $region10: #{tpu_custom_call.1} parent=1 // pred_check
      _
    $region11: #{tpu_custom_call.1} parent=1 // pred_check_branch
      %26 = sbr.rel (0) target = $region13
    $region12: #{tpu_custom_call.1} parent=1 // pred_region
      _
    $region13: #{tpu_custom_call.1} parent=1 // pred_fallthru
      _
    // Predicated region
    $region14: #{tpu_custom_call.1} parent=1 // pred_check
      _
    $region15: #{tpu_custom_call.1} parent=1 // pred_check_branch
      %28 = sbr.rel (0) target = $region17
    $region16: #{tpu_custom_call.1} parent=1 // pred_region
      _
    $region17: #{tpu_custom_call.1} parent=1 // pred_fallthru
      _
    // Predicated region
    $region18: #{tpu_custom_call.1} parent=1 // pred_check
      _
    $region19: #{tpu_custom_call.1} parent=1 // pred_check_branch
      %30 = sbr.rel (0) target = $region21
    $region20: #{tpu_custom_call.1} parent=1 // pred_region
      _
    $region21: #{tpu_custom_call.1} parent=1 // pred_fallthru
      _
    // Predicated region
    $region22: #{tpu_custom_call.1} parent=1 // pred_check
      _
    $region23: #{tpu_custom_call.1} parent=1 // pred_check_branch
      %32 = sbr.rel (0) target = $region25
    $region24: #{tpu_custom_call.1} parent=1 // pred_region
      _
    $region25: #{tpu_custom_call.1} parent=1 // pred_fallthru
      _
    // Predicated region
    $region26: #{tpu_custom_call.1} parent=1 // pred_check
      _
    $region27: #{tpu_custom_call.1} parent=1 // pred_check_branch
      %34 = sbr.rel (0) target = $region29
    $region28: #{tpu_custom_call.1} parent=1 // pred_region
      _
    $region29: #{tpu_custom_call.1} parent=1 // pred_fallthru
      _
    // Predicated region
    $region30: #{tpu_custom_call.1} parent=1 // pred_check
      _
    $region31: #{tpu_custom_call.1} parent=1 // pred_check_branch
      %36 = sbr.rel (0) target = $region33
    $region32: #{tpu_custom_call.1} parent=1 // pred_region
      _
    $region33: #{tpu_custom_call.1} parent=1 // pred_fallthru
      _
    // Predicated region
    $region34: #{tpu_custom_call.1} parent=1 // pred_check
      _
    $region35: #{tpu_custom_call.1} parent=1 // pred_check_branch
      %38 = sbr.rel (0) target = $region37
    $region36: #{tpu_custom_call.1} parent=1 // pred_region
      _
    $region37: #{tpu_custom_call.1} parent=1 // pred_fallthru
      _
    // Predicated region
    $region38: #{tpu_custom_call.1} parent=1 // pred_check
      _
    $region39: #{tpu_custom_call.1} parent=1 // pred_check_branch
      %40 = sbr.rel (0) target = $region41
    $region40: #{tpu_custom_call.1} parent=1 // pred_region
      _
    $region41: #{tpu_custom_call.1} parent=1 // pred_fallthru
      _
    // Predicated region
    $region42: #{tpu_custom_call.1} parent=1 // pred_check
      _
    $region43: #{tpu_custom_call.1} parent=1 // pred_check_branch
      %42 = sbr.rel (0) target = $region45
    $region44: #{tpu_custom_call.1} parent=1 // pred_region
      _
    $region45: #{tpu_custom_call.1} parent=1 // pred_fallthru
      _
    // Predicated region
    $region46: #{tpu_custom_call.1} parent=1 // pred_check
      _
    $region47: #{tpu_custom_call.1} parent=1 // pred_check_branch
      %44 = sbr.rel (0) target = $region49
    $region48: #{tpu_custom_call.1} parent=1 // pred_region
      _
    $region49: #{tpu_custom_call.1} parent=1 // pred_fallthru
      _
    // Predicated region
    $region50: #{tpu_custom_call.1} parent=1 // pred_check
      _
    $region51: #{tpu_custom_call.1} parent=1 // pred_check_branch
      %46 = sbr.rel (0) target = $region53
    $region52: #{tpu_custom_call.1} parent=1 // pred_region
      _
    $region53: #{tpu_custom_call.1} parent=1 // pred_fallthru
      _
    %v47 = vld [vmem:[%s0] sm:$0xff]
    %v48 = vld [vmem:[%s0 + $0x8] sm:$0xff]
    %v49 = vld [vmem:[%s1] sm:$0xff]
    %v50 = vld [vmem:[%s1 + $0x8] sm:$0xff]
    %v51 = vld [vmem:[%s2] sm:$0x1]
    %v53 = vlaneseq
    %v54 = vshrl.u32 %v53, 7
    %v55 = vsub.s32 0, %v54
    %v56 = vrot.slane %v51, %v55
    %vm58 = vcmask 130048
    %v60 = vsel %vm58, %v47, 0
    %v63 = vsel %vm58, %v48, 0
    %65 = vmatprep.subr.mxu0 0.0
    %66 = vmatpush1.msra.mxu0 %v49
    %67 = vmatprep.subr.mxu0 0.0
    %68 = vmatpush1.msra.mxu0 %v50
    %69 = vmatprep.subr.mxu0 0.0
    %70 = vmatpush1.msra.mxu0 0.0
    %71 = vmatprep.subr.mxu0 0.0
    %72 = vmatpush1.msra.mxu0 0.0
    %73 = vmatprep.subr.mxu0 0.0
    %74 = vmatpush1.msra.mxu0 0.0
    %75 = vmatprep.subr.mxu0 0.0
    %76 = vmatpush1.msra.mxu0 0.0
    %77 = vmatprep.subr.mxu0 0.0
    %78 = vmatpush1.msra.mxu0 0.0
    %79 = vmatprep.subr.mxu0 0.0
    %80 = vmatpush1.msra.mxu0 0.0
    %81 = vmatprep.subr.mxu0 0.0
    %82 = vmatpush1.msra.mxu0 0.0
    %83 = vmatprep.subr.mxu0 0.0
    %84 = vmatpush1.msra.mxu0 0.0
    %85 = vmatprep.subr.mxu0 0.0
    %86 = vmatpush1.msra.mxu0 0.0
    %87 = vmatprep.subr.mxu0 0.0
    %88 = vmatpush1.msra.mxu0 0.0
    %89 = vmatprep.subr.mxu0 0.0
    %90 = vmatpush1.msra.mxu0 0.0
    %91 = vmatprep.subr.mxu0 0.0
    %92 = vmatpush1.msra.mxu0 0.0
    %93 = vmatprep.subr.mxu0 0.0
    %94 = vmatpush1.msra.mxu0 0.0
    %95 = vmatprep.subr.mxu0 0.0
    %96 = vmatpush1.msra.mxu0 0.0
    %97 = vmatprep.subr.mxu0 0.0
    %98 = vmatpush1.msra.mxu0 0.0
    %99 = vmatprep.subr.mxu0 0.0
    %100 = vmatpush1.msra.mxu0 0.0
    %101 = vmatprep.subr.mxu0 0.0
    %102 = vmatpush1.msra.mxu0 0.0
    %103 = vmatprep.subr.mxu0 0.0
    %104 = vmatpush1.msra.mxu0 0.0
    %105 = vmatprep.subr.mxu0 0.0
    %106 = vmatpush1.msra.mxu0 0.0
    %107 = vmatprep.subr.mxu0 0.0
    %108 = vmatpush1.msra.mxu0 0.0
    %109 = vmatprep.subr.mxu0 0.0
    %110 = vmatpush1.msra.mxu0 0.0
    %111 = vmatprep.subr.mxu0 0.0
    %112 = vmatpush1.msra.mxu0 0.0
    %113 = vmatprep.subr.mxu0 0.0
    %114 = vmatpush1.msra.mxu0 0.0
    %115 = vmatprep.subr.mxu0 0.0
    %116 = vmatpush1.msra.mxu0 0.0
    %117 = vmatprep.subr.mxu0 0.0
    %118 = vmatpush1.msra.mxu0 0.0
    %119 = vmatprep.subr.mxu0 0.0
    %120 = vmatpush1.msra.mxu0 0.0
    %121 = vmatprep.subr.mxu0 0.0
    %122 = vmatpush1.msra.mxu0 0.0
    %123 = vmatprep.subr.mxu0 0.0
    %124 = vmatpush1.msra.mxu0 0.0
    %125 = vmatprep.subr.mxu0 0.0
    %126 = vmatpush1.msra.mxu0 0.0
    %127 = vmatprep.subr.mxu0 0.0
    %128 = vmatpush1.msra.mxu0 0.0
    %129 = vmatprep.mubr.f32.mxu0 0.0
    %130 = vmatmul.mubr.f32.gmra.mrb[0].mxu0 %v60
    %v131 = vpop.f32.mrb[0].mxu0
    %v132 = vadd.f32 %v56, %v131
    %v133 = vpop.f32.mrb[0].mxu0
    %134 = vmatprep.mubr.f32.mxu0 0.0
    %135 = vmatmul.mubr.f32.gmra.mrb[0].mxu0 %v63
    %v136 = vpop.f32.mrb[0].mxu0
    %v137 = vadd.f32 %v56, %v136
    %v138 = vpop.f32.mrb[0].mxu0
    %139 = vdwg.mxu0
    %v140 = vmax.f32 %v132, 0.0
    %v141 = vmax.f32 %v137, 0.0
    %v142 = vmul.f32 %v140, 0.5
    %v143 = vmul.f32 %v141, 0.5
    %v144 = vtanh.pop %v142
    %v145 = vtanh.pop %v143
    %v146 = vmul.f32 %v144, 0.5
    %v147 = vmul.f32 %v145, 0.5
    %v148 = vadd.f32 %v146, 0.5
    %v149 = vadd.f32 %v147, 0.5
    %v150 = vld [vmem:[%s3] sm:$0xff]
    %v151 = vld [vmem:[%s3 + $0x8] sm:$0xff]
    %v152 = vld [vmem:[%s3 + $0x10] sm:$0xff]
    %v153 = vld [vmem:[%s3 + $0x18] sm:$0xff]
    %v154 = vld [vmem:[%s3 + $0x20] sm:$0xff]
    %v155 = vld [vmem:[%s3 + $0x28] sm:$0xff]
    %v156 = vld [vmem:[%s3 + $0x30] sm:$0xff]
    %v157 = vld [vmem:[%s3 + $0x38] sm:$0xff]
    %v158 = vld [vmem:[%s4] sm:$0x1]
    %v160 = vlaneseq
    %v161 = vshrl.u32 %v160, 7
    %v162 = vsub.s32 0, %v161
    %v163 = vrot.slane %v158, %v162
    %vm165 = vcmask 523264
    %v167 = vsel %vm165, %v148, 0
    %v170 = vsel %vm165, %v149, 0
    %172 = vmatprep.subr.mxu0 0.0
    %173 = vmatpush1.msra.mxu0 %v150
    %174 = vmatprep.subr.mxu0 0.0
    %175 = vmatpush1.msra.mxu0 %v151
    %176 = vmatprep.subr.mxu0 0.0
    %177 = vmatpush1.msra.mxu0 %v152
    %178 = vmatprep.subr.mxu0 0.0
    %179 = vmatpush1.msra.mxu0 %v153
    %180 = vmatprep.subr.mxu0 0.0
    %181 = vmatpush1.msra.mxu0 %v154
    %182 = vmatprep.subr.mxu0 0.0
    %183 = vmatpush1.msra.mxu0 %v155
    %184 = vmatprep.subr.mxu0 0.0
    %185 = vmatpush1.msra.mxu0 %v156
    %186 = vmatprep.subr.mxu0 0.0
    %187 = vmatpush1.msra.mxu0 %v157
    %188 = vmatprep.subr.mxu0 0.0
    %189 = vmatpush1.msra.mxu0 0.0
    %190 = vmatprep.subr.mxu0 0.0
    %191 = vmatpush1.msra.mxu0 0.0
    %192 = vmatprep.subr.mxu0 0.0
    %193 = vmatpush1.msra.mxu0 0.0
    %194 = vmatprep.subr.mxu0 0.0
    %195 = vmatpush1.msra.mxu0 0.0
    %196 = vmatprep.subr.mxu0 0.0
    %197 = vmatpush1.msra.mxu0 0.0
    %198 = vmatprep.subr.mxu0 0.0
    %199 = vmatpush1.msra.mxu0 0.0
    %200 = vmatprep.subr.mxu0 0.0
    %201 = vmatpush1.msra.mxu0 0.0
    %202 = vmatprep.subr.mxu0 0.0
    %203 = vmatpush1.msra.mxu0 0.0
    %204 = vmatprep.subr.mxu0 0.0
    %205 = vmatpush1.msra.mxu0 0.0
    %206 = vmatprep.subr.mxu0 0.0
    %207 = vmatpush1.msra.mxu0 0.0
    %208 = vmatprep.subr.mxu0 0.0
    %209 = vmatpush1.msra.mxu0 0.0
    %210 = vmatprep.subr.mxu0 0.0
    %211 = vmatpush1.msra.mxu0 0.0
    %212 = vmatprep.subr.mxu0 0.0
    %213 = vmatpush1.msra.mxu0 0.0
    %214 = vmatprep.subr.mxu0 0.0
    %215 = vmatpush1.msra.mxu0 0.0
    %216 = vmatprep.subr.mxu0 0.0
    %217 = vmatpush1.msra.mxu0 0.0
    %218 = vmatprep.subr.mxu0 0.0
    %219 = vmatpush1.msra.mxu0 0.0
    %220 = vmatprep.subr.mxu0 0.0
    %221 = vmatpush1.msra.mxu0 0.0
    %222 = vmatprep.subr.mxu0 0.0
    %223 = vmatpush1.msra.mxu0 0.0
    %224 = vmatprep.subr.mxu0 0.0
    %225 = vmatpush1.msra.mxu0 0.0
    %226 = vmatprep.subr.mxu0 0.0
    %227 = vmatpush1.msra.mxu0 0.0
    %228 = vmatprep.subr.mxu0 0.0
    %229 = vmatpush1.msra.mxu0 0.0
    %230 = vmatprep.subr.mxu0 0.0
    %231 = vmatpush1.msra.mxu0 0.0
    %232 = vmatprep.subr.mxu0 0.0
    %233 = vmatpush1.msra.mxu0 0.0
    %234 = vmatprep.subr.mxu0 0.0
    %235 = vmatpush1.msra.mxu0 0.0
    %236 = vmatprep.mubr.f32.mxu0 0.0
    %237 = vmatmul.mubr.f32.gmra.mrb[0].mxu0 %v167
    %v238 = vpop.f32.mrb[0].mxu0
    %v239 = vadd.f32 %v163, %v238
    %v240 = vpop.f32.mrb[0].mxu0
    %241 = vmatprep.mubr.f32.mxu0 0.0
    %242 = vmatmul.mubr.f32.gmra.mrb[0].mxu0 %v170
    %v243 = vpop.f32.mrb[0].mxu0
    %v244 = vadd.f32 %v163, %v243
    %v245 = vpop.f32.mrb[0].mxu0
    %246 = vdwg.mxu0
    %v247 = vmul.f32 %v239, 0.5
    %v248 = vmul.f32 %v244, 0.5
    %v249 = vtanh.pop %v247
    %v250 = vtanh.pop %v248
    %v251 = vmul.f32 %v249, 0.5
    %v252 = vmul.f32 %v250, 0.5
    %v253 = vadd.f32 %v251, 0.5
    %v254 = vadd.f32 %v252, 0.5
    %v255 = vld [vmem:[%s5] sm:$0xff]
    %v256 = vld [vmem:[%s5 + $0x8] sm:$0xff]
    %v257 = vld [vmem:[%s5 + $0x10] sm:$0xff]
    %v258 = vld [vmem:[%s5 + $0x18] sm:$0xff]
    %v259 = vld [vmem:[%s6] sm:$0x1]
    %v261 = vlaneseq
    %v262 = vshrl.u32 %v261, 7
    %v263 = vsub.s32 0, %v262
    %v264 = vrot.slane %v259, %v263
    %vm266 = vcmask 261120
    %v268 = vsel %vm266, %v253, 0
    %v271 = vsel %vm266, %v254, 0
    %273 = vmatprep.subr.mxu0 0.0
    %274 = vmatpush1.msra.mxu0 %v255
    %275 = vmatprep.subr.mxu0 0.0
    %276 = vmatpush1.msra.mxu0 %v256
    %277 = vmatprep.subr.mxu0 0.0
    %278 = vmatpush1.msra.mxu0 %v257
    %279 = vmatprep.subr.mxu0 0.0
    %280 = vmatpush1.msra.mxu0 %v258
    %281 = vmatprep.subr.mxu0 0.0
    %282 = vmatpush1.msra.mxu0 0.0
    %283 = vmatprep.subr.mxu0 0.0
    %284 = vmatpush1.msra.mxu0 0.0
    %285 = vmatprep.subr.mxu0 0.0
    %286 = vmatpush1.msra.mxu0 0.0
    %287 = vmatprep.subr.mxu0 0.0
    %288 = vmatpush1.msra.mxu0 0.0
    %289 = vmatprep.subr.mxu0 0.0
    %290 = vmatpush1.msra.mxu0 0.0
    %291 = vmatprep.subr.mxu0 0.0
    %292 = vmatpush1.msra.mxu0 0.0
    %293 = vmatprep.subr.mxu0 0.0
    %294 = vmatpush1.msra.mxu0 0.0
    %295 = vmatprep.subr.mxu0 0.0
    %296 = vmatpush1.msra.mxu0 0.0
    %297 = vmatprep.subr.mxu0 0.0
    %298 = vmatpush1.msra.mxu0 0.0
    %299 = vmatprep.subr.mxu0 0.0
    %300 = vmatpush1.msra.mxu0 0.0
    %301 = vmatprep.subr.mxu0 0.0
    %302 = vmatpush1.msra.mxu0 0.0
    %303 = vmatprep.subr.mxu0 0.0
    %304 = vmatpush1.msra.mxu0 0.0
    %305 = vmatprep.subr.mxu0 0.0
    %306 = vmatpush1.msra.mxu0 0.0
    %307 = vmatprep.subr.mxu0 0.0
    %308 = vmatpush1.msra.mxu0 0.0
    %309 = vmatprep.subr.mxu0 0.0
    %310 = vmatpush1.msra.mxu0 0.0
    %311 = vmatprep.subr.mxu0 0.0
    %312 = vmatpush1.msra.mxu0 0.0
    %313 = vmatprep.subr.mxu0 0.0
    %314 = vmatpush1.msra.mxu0 0.0
    %315 = vmatprep.subr.mxu0 0.0
    %316 = vmatpush1.msra.mxu0 0.0
    %317 = vmatprep.subr.mxu0 0.0
    %318 = vmatpush1.msra.mxu0 0.0
    %319 = vmatprep.subr.mxu0 0.0
    %320 = vmatpush1.msra.mxu0 0.0
    %321 = vmatprep.subr.mxu0 0.0
    %322 = vmatpush1.msra.mxu0 0.0
    %323 = vmatprep.subr.mxu0 0.0
    %324 = vmatpush1.msra.mxu0 0.0
    %325 = vmatprep.subr.mxu0 0.0
    %326 = vmatpush1.msra.mxu0 0.0
    %327 = vmatprep.subr.mxu0 0.0
    %328 = vmatpush1.msra.mxu0 0.0
    %329 = vmatprep.subr.mxu0 0.0
    %330 = vmatpush1.msra.mxu0 0.0
    %331 = vmatprep.subr.mxu0 0.0
    %332 = vmatpush1.msra.mxu0 0.0
    %333 = vmatprep.subr.mxu0 0.0
    %334 = vmatpush1.msra.mxu0 0.0
    %335 = vmatprep.subr.mxu0 0.0
    %336 = vmatpush1.msra.mxu0 0.0
    %337 = vmatprep.mubr.f32.mxu0 0.0
    %338 = vmatmul.mubr.f32.gmra.mrb[0].mxu0 %v268
    %v339 = vpop.f32.mrb[0].mxu0
    %v340 = vadd.f32 %v264, %v339
    %v341 = vpop.f32.mrb[0].mxu0
    %342 = vmatprep.mubr.f32.mxu0 0.0
    %343 = vmatmul.mubr.f32.gmra.mrb[0].mxu0 %v271
    %v344 = vpop.f32.mrb[0].mxu0
    %v345 = vadd.f32 %v264, %v344
    %v346 = vpop.f32.mrb[0].mxu0
    %347 = vdwg.mxu0
    %v348 = vmul.f32 %v340, 0.5
    %v349 = vmul.f32 %v345, 0.5
    %v350 = vtanh.pop %v348
    %v351 = vtanh.pop %v349
    %v352 = vmul.f32 %v350, 0.5
    %v353 = vmul.f32 %v351, 0.5
    %v354 = vadd.f32 %v352, 0.5
    %v355 = vadd.f32 %v353, 0.5
    %v356 = vld [vmem:[%s7] sm:$0xff]
    %v357 = vld [vmem:[%s7 + $0x8] sm:$0xff]
    %v358 = vld [vmem:[%s7 + $0x10] sm:$0xff]
    %v359 = vld [vmem:[%s8] sm:$0x1]
    %v361 = vlaneseq
    %v362 = vshrl.u32 %v361, 7
    %v363 = vsub.s32 0, %v362
    %v364 = vrot.slane %v359, %v363
    %vm366 = vcmask 195584
    %v368 = vsel %vm366, %v354, 0
    %v371 = vsel %vm366, %v355, 0
    %373 = vmatprep.subr.mxu0 0.0
    %374 = vmatpush1.msra.mxu0 %v356
    %375 = vmatprep.subr.mxu0 0.0
    %376 = vmatpush1.msra.mxu0 %v357
    %377 = vmatprep.subr.mxu0 0.0
    %378 = vmatpush1.msra.mxu0 %v358
    %379 = vmatprep.subr.mxu0 0.0
    %380 = vmatpush1.msra.mxu0 0.0
    %381 = vmatprep.subr.mxu0 0.0
    %382 = vmatpush1.msra.mxu0 0.0
    %383 = vmatprep.subr.mxu0 0.0
    %384 = vmatpush1.msra.mxu0 0.0
    %385 = vmatprep.subr.mxu0 0.0
    %386 = vmatpush1.msra.mxu0 0.0
    %387 = vmatprep.subr.mxu0 0.0
    %388 = vmatpush1.msra.mxu0 0.0
    %389 = vmatprep.subr.mxu0 0.0
    %390 = vmatpush1.msra.mxu0 0.0
    %391 = vmatprep.subr.mxu0 0.0
    %392 = vmatpush1.msra.mxu0 0.0
    %393 = vmatprep.subr.mxu0 0.0
    %394 = vmatpush1.msra.mxu0 0.0
    %395 = vmatprep.subr.mxu0 0.0
    %396 = vmatpush1.msra.mxu0 0.0
    %397 = vmatprep.subr.mxu0 0.0
    %398 = vmatpush1.msra.mxu0 0.0
    %399 = vmatprep.subr.mxu0 0.0
    %400 = vmatpush1.msra.mxu0 0.0
    %401 = vmatprep.subr.mxu0 0.0
    %402 = vmatpush1.msra.mxu0 0.0
    %403 = vmatprep.subr.mxu0 0.0
    %404 = vmatpush1.msra.mxu0 0.0
    %405 = vmatprep.subr.mxu0 0.0
    %406 = vmatpush1.msra.mxu0 0.0
    %407 = vmatprep.subr.mxu0 0.0
    %408 = vmatpush1.msra.mxu0 0.0
    %409 = vmatprep.subr.mxu0 0.0
    %410 = vmatpush1.msra.mxu0 0.0
    %411 = vmatprep.subr.mxu0 0.0
    %412 = vmatpush1.msra.mxu0 0.0
    %413 = vmatprep.subr.mxu0 0.0
    %414 = vmatpush1.msra.mxu0 0.0
    %415 = vmatprep.subr.mxu0 0.0
    %416 = vmatpush1.msra.mxu0 0.0
    %417 = vmatprep.subr.mxu0 0.0
    %418 = vmatpush1.msra.mxu0 0.0
    %419 = vmatprep.subr.mxu0 0.0
    %420 = vmatpush1.msra.mxu0 0.0
    %421 = vmatprep.subr.mxu0 0.0
    %422 = vmatpush1.msra.mxu0 0.0
    %423 = vmatprep.subr.mxu0 0.0
    %424 = vmatpush1.msra.mxu0 0.0
    %425 = vmatprep.subr.mxu0 0.0
    %426 = vmatpush1.msra.mxu0 0.0
    %427 = vmatprep.subr.mxu0 0.0
    %428 = vmatpush1.msra.mxu0 0.0
    %429 = vmatprep.subr.mxu0 0.0
    %430 = vmatpush1.msra.mxu0 0.0
    %431 = vmatprep.subr.mxu0 0.0
    %432 = vmatpush1.msra.mxu0 0.0
    %433 = vmatprep.subr.mxu0 0.0
    %434 = vmatpush1.msra.mxu0 0.0
    %435 = vmatprep.subr.mxu0 0.0
    %436 = vmatpush1.msra.mxu0 0.0
    %437 = vmatprep.mubr.f32.mxu0 0.0
    %438 = vmatmul.mubr.f32.gmra.mrb[0].mxu0 %v368
    %v439 = vpop.f32.mrb[0].mxu0
    %v440 = vadd.f32 %v364, %v439
    %v441 = vpop.f32.mrb[0].mxu0
    %442 = vmatprep.mubr.f32.mxu0 0.0
    %443 = vmatmul.mubr.f32.gmra.mrb[0].mxu0 %v371
    %v444 = vpop.f32.mrb[0].mxu0
    %v445 = vadd.f32 %v364, %v444
    %v446 = vpop.f32.mrb[0].mxu0
    %447 = vdwg.mxu0
    %v448 = vmul.f32 %v440, 0.5
    %v449 = vmul.f32 %v445, 0.5
    %v450 = vtanh.pop %v448
    %v451 = vtanh.pop %v449
    %v452 = vmul.f32 %v450, 0.5
    %v453 = vmul.f32 %v451, 0.5
    %v454 = vadd.f32 %v452, 0.5
    %v455 = vadd.f32 %v453, 0.5
    %v456 = vld [vmem:[%s9] sm:$0xff]
    %v457 = vld [vmem:[%s9 + $0x8] sm:$0xf]
    %v458 = vld [vmem:[%s10] sm:$0x1]
    %v460 = vlaneseq
    %v461 = vshrl.u32 %v460, 7
    %v462 = vsub.s32 0, %v461
    %v463 = vrot.slane %v458, %v462
    %vm465 = vcmask 97280
    %v467 = vsel %vm465, %v454, 0
    %v470 = vsel %vm465, %v455, 0
    %vm472 = vcmask 1043456
    %v474 = vsel %vm472, %v457, 0
    %476 = vmatprep.subr.mxu0 0.0
    %477 = vmatpush1.msra.mxu0 %v456
    %478 = vmatprep.subr.mxu0 0.0
    %479 = vmatpush1.msra.mxu0 %v474
    %480 = vmatprep.subr.mxu0 0.0
    %481 = vmatpush1.msra.mxu0 0.0
    %482 = vmatprep.subr.mxu0 0.0
    %483 = vmatpush1.msra.mxu0 0.0
    %484 = vmatprep.subr.mxu0 0.0
    %485 = vmatpush1.msra.mxu0 0.0
    %486 = vmatprep.subr.mxu0 0.0
    %487 = vmatpush1.msra.mxu0 0.0
    %488 = vmatprep.subr.mxu0 0.0
    %489 = vmatpush1.msra.mxu0 0.0
    %490 = vmatprep.subr.mxu0 0.0
    %491 = vmatpush1.msra.mxu0 0.0
    %492 = vmatprep.subr.mxu0 0.0
    %493 = vmatpush1.msra.mxu0 0.0
    %494 = vmatprep.subr.mxu0 0.0
    %495 = vmatpush1.msra.mxu0 0.0
    %496 = vmatprep.subr.mxu0 0.0
    %497 = vmatpush1.msra.mxu0 0.0
    %498 = vmatprep.subr.mxu0 0.0
    %499 = vmatpush1.msra.mxu0 0.0
    %500 = vmatprep.subr.mxu0 0.0
    %501 = vmatpush1.msra.mxu0 0.0
    %502 = vmatprep.subr.mxu0 0.0
    %503 = vmatpush1.msra.mxu0 0.0
    %504 = vmatprep.subr.mxu0 0.0
    %505 = vmatpush1.msra.mxu0 0.0
    %506 = vmatprep.subr.mxu0 0.0
    %507 = vmatpush1.msra.mxu0 0.0
    %508 = vmatprep.subr.mxu0 0.0
    %509 = vmatpush1.msra.mxu0 0.0
    %510 = vmatprep.subr.mxu0 0.0
    %511 = vmatpush1.msra.mxu0 0.0
    %512 = vmatprep.subr.mxu0 0.0
    %513 = vmatpush1.msra.mxu0 0.0
    %514 = vmatprep.subr.mxu0 0.0
    %515 = vmatpush1.msra.mxu0 0.0
    %516 = vmatprep.subr.mxu0 0.0
    %517 = vmatpush1.msra.mxu0 0.0
    %518 = vmatprep.subr.mxu0 0.0
    %519 = vmatpush1.msra.mxu0 0.0
    %520 = vmatprep.subr.mxu0 0.0
    %521 = vmatpush1.msra.mxu0 0.0
    %522 = vmatprep.subr.mxu0 0.0
    %523 = vmatpush1.msra.mxu0 0.0
    %524 = vmatprep.subr.mxu0 0.0
    %525 = vmatpush1.msra.mxu0 0.0
    %526 = vmatprep.subr.mxu0 0.0
    %527 = vmatpush1.msra.mxu0 0.0
    %528 = vmatprep.subr.mxu0 0.0
    %529 = vmatpush1.msra.mxu0 0.0
    %530 = vmatprep.subr.mxu0 0.0
    %531 = vmatpush1.msra.mxu0 0.0
    %532 = vmatprep.subr.mxu0 0.0
    %533 = vmatpush1.msra.mxu0 0.0
    %534 = vmatprep.subr.mxu0 0.0
    %535 = vmatpush1.msra.mxu0 0.0
    %536 = vmatprep.subr.mxu0 0.0
    %537 = vmatpush1.msra.mxu0 0.0
    %538 = vmatprep.subr.mxu0 0.0
    %539 = vmatpush1.msra.mxu0 0.0
    %540 = vmatprep.mubr.f32.mxu0 0.0
    %541 = vmatmul.mubr.f32.gmra.mrb[0].mxu0 %v467
    %v542 = vpop.f32.mrb[0].mxu0
    %v543 = vadd.f32 %v463, %v542
    %v544 = vpop.f32.mrb[0].mxu0
    %545 = vmatprep.mubr.f32.mxu0 0.0
    %546 = vmatmul.mubr.f32.gmra.mrb[0].mxu0 %v470
    %v547 = vpop.f32.mrb[0].mxu0
    %v548 = vadd.f32 %v463, %v547
    %v549 = vpop.f32.mrb[0].mxu0
    %550 = vdwg.mxu0
    %v551 = vmul.f32 %v543, 0.5
    %v552 = vmul.f32 %v548, 0.5
    %v553 = vtanh.pop %v551
    %v554 = vtanh.pop %v552
    %v555 = vmul.f32 %v553, 0.5
    %v556 = vmul.f32 %v554, 0.5
    %v557 = vadd.f32 %v555, 0.5
    %v558 = vadd.f32 %v556, 0.5
    %v559 = vld [vmem:[%s11] sm:$0xff]
    %v560 = vld [vmem:[#allocation2] sm:$0x1]
    %v562 = vlaneseq
    %v563 = vshrl.u32 %v562, 7
    %v564 = vsub.s32 0, %v563
    %v565 = vrot.slane %v560, %v564
    %vm567 = vcmask 64512
    %v569 = vsel %vm567, %v557, 0
    %v572 = vsel %vm567, %v558, 0
    %574 = vmatprep.subr.mxu0 0.0
    %575 = vmatpush1.msra.mxu0 %v559
    %576 = vmatprep.subr.mxu0 0.0
    %577 = vmatpush1.msra.mxu0 0.0
    %578 = vmatprep.subr.mxu0 0.0
    %579 = vmatpush1.msra.mxu0 0.0
    %580 = vmatprep.subr.mxu0 0.0
    %581 = vmatpush1.msra.mxu0 0.0
    %582 = vmatprep.subr.mxu0 0.0
    %583 = vmatpush1.msra.mxu0 0.0
    %584 = vmatprep.subr.mxu0 0.0
    %585 = vmatpush1.msra.mxu0 0.0
    %586 = vmatprep.subr.mxu0 0.0
    %587 = vmatpush1.msra.mxu0 0.0
    %588 = vmatprep.subr.mxu0 0.0
    %589 = vmatpush1.msra.mxu0 0.0
    %590 = vmatprep.subr.mxu0 0.0
    %591 = vmatpush1.msra.mxu0 0.0
    %592 = vmatprep.subr.mxu0 0.0
    %593 = vmatpush1.msra.mxu0 0.0
    %594 = vmatprep.subr.mxu0 0.0
    %595 = vmatpush1.msra.mxu0 0.0
    %596 = vmatprep.subr.mxu0 0.0
    %597 = vmatpush1.msra.mxu0 0.0
    %598 = vmatprep.subr.mxu0 0.0
    %599 = vmatpush1.msra.mxu0 0.0
    %600 = vmatprep.subr.mxu0 0.0
    %601 = vmatpush1.msra.mxu0 0.0
    %602 = vmatprep.subr.mxu0 0.0
    %603 = vmatpush1.msra.mxu0 0.0
    %604 = vmatprep.subr.mxu0 0.0
    %605 = vmatpush1.msra.mxu0 0.0
    %606 = vmatprep.subr.mxu0 0.0
    %607 = vmatpush1.msra.mxu0 0.0
    %608 = vmatprep.subr.mxu0 0.0
    %609 = vmatpush1.msra.mxu0 0.0
    %610 = vmatprep.subr.mxu0 0.0
    %611 = vmatpush1.msra.mxu0 0.0
    %612 = vmatprep.subr.mxu0 0.0
    %613 = vmatpush1.msra.mxu0 0.0
    %614 = vmatprep.subr.mxu0 0.0
    %615 = vmatpush1.msra.mxu0 0.0
    %616 = vmatprep.subr.mxu0 0.0
    %617 = vmatpush1.msra.mxu0 0.0
    %618 = vmatprep.subr.mxu0 0.0
    %619 = vmatpush1.msra.mxu0 0.0
    %620 = vmatprep.subr.mxu0 0.0
    %621 = vmatpush1.msra.mxu0 0.0
    %622 = vmatprep.subr.mxu0 0.0
    %623 = vmatpush1.msra.mxu0 0.0
    %624 = vmatprep.subr.mxu0 0.0
    %625 = vmatpush1.msra.mxu0 0.0
    %626 = vmatprep.subr.mxu0 0.0
    %627 = vmatpush1.msra.mxu0 0.0
    %628 = vmatprep.subr.mxu0 0.0
    %629 = vmatpush1.msra.mxu0 0.0
    %630 = vmatprep.subr.mxu0 0.0
    %631 = vmatpush1.msra.mxu0 0.0
    %632 = vmatprep.subr.mxu0 0.0
    %633 = vmatpush1.msra.mxu0 0.0
    %634 = vmatprep.subr.mxu0 0.0
    %635 = vmatpush1.msra.mxu0 0.0
    %636 = vmatprep.subr.mxu0 0.0
    %637 = vmatpush1.msra.mxu0 0.0
    %638 = vmatprep.mubr.f32.mxu0 0.0
    %639 = vmatmul.mubr.f32.gmra.mrb[0].mxu0 %v569
    %v640 = vpop.f32.mrb[0].mxu0
    %v641 = vadd.f32 %v565, %v640
    %v642 = vpop.f32.mrb[0].mxu0
    %643 = vmatprep.mubr.f32.mxu0 0.0
    %644 = vmatmul.mubr.f32.gmra.mrb[0].mxu0 %v572
    %v645 = vpop.f32.mrb[0].mxu0
    %v646 = vadd.f32 %v565, %v645
    %v647 = vpop.f32.mrb[0].mxu0
    %648 = vdwg.mxu0
    %v649 = vmul.f32 %v641, 0.5
    %v650 = vmul.f32 %v646, 0.5
    %v651 = vtanh.pop %v649
    %v652 = vtanh.pop %v650
    %v653 = vmul.f32 %v651, 0.5
    %v654 = vmul.f32 %v652, 0.5
    %v655 = vadd.f32 %v653, 0.5
    %v656 = vadd.f32 %v654, 0.5
    %657 = vxpose.xlu0.b32.start [1/16] %v655, 128
    %658 = vxpose.xlu0.b32.cont [2/16] %v656, 128
    %659 = vxpose.xlu0.b32.cont [3/16] 0.0, 128
    %660 = vxpose.xlu0.b32.cont [4/16] 0.0, 128
    %661 = vxpose.xlu0.b32.cont [5/16] 0.0, 128
    %662 = vxpose.xlu0.b32.cont [6/16] 0.0, 128
    %663 = vxpose.xlu0.b32.cont [7/16] 0.0, 128
    %664 = vxpose.xlu0.b32.cont [8/16] 0.0, 128
    %665 = vxpose.xlu0.b32.cont [9/16] 0.0, 128
    %666 = vxpose.xlu0.b32.cont [10/16] 0.0, 128
    %667 = vxpose.xlu0.b32.cont [11/16] 0.0, 128
    %668 = vxpose.xlu0.b32.cont [12/16] 0.0, 128
    %669 = vxpose.xlu0.b32.cont [13/16] 0.0, 128
    %670 = vxpose.xlu0.b32.cont [14/16] 0.0, 128
    %671 = vxpose.xlu0.b32.cont [15/16] 0.0, 128
    %672 = vxpose.xlu0.b32.end [16/16] 0.0, 128
    %v673 = vpop.trf.xlu0
    %v674 = vpop.trf.xlu0
    %v675 = vpop.trf.xlu0
    %v676 = vpop.trf.xlu0
    %v677 = vpop.trf.xlu0
    %v678 = vpop.trf.xlu0
    %v679 = vpop.trf.xlu0
    %v680 = vpop.trf.xlu0
    %v681 = vpop.trf.xlu0
    %v682 = vpop.trf.xlu0
    %v683 = vpop.trf.xlu0
    %v684 = vpop.trf.xlu0
    %v685 = vpop.trf.xlu0
    %v686 = vpop.trf.xlu0
    %v687 = vpop.trf.xlu0
    %v688 = vpop.trf.xlu0
    %vm689 = vcmask 122880
    %690 = vst.msk [vmem:[#allocation3] sm:$0x1] %vm689, %v673
    // Predicated region
    $region54: #{tpu_custom_call.1} parent=1 // pred_check
      _
    $region55: #{tpu_custom_call.1} parent=1 // pred_check_branch
      %692 = sbr.rel (0) target = $region57
    $region56: #{tpu_custom_call.1} parent=1 // pred_region
      %s694 = ssub.s32 16, 16
      %695 = vsyncadd [#allocation4], %s694
      %s697 = sshll.u32 [#allocation3], 4
      %s698 = int_to_ptr.vmem [resolvable:$true] %s697
      %700 = dma.vmem_to_hbm [thread:$0]  %s698, 16, %s13, [#allocation4]
    $region57: #{tpu_custom_call.1} parent=1 // pred_fallthru
      _
    // Predicated region
    $region58: #{tpu_custom_call.1} parent=1 // pred_check
      _
    $region59: #{tpu_custom_call.1} parent=1 // pred_check_branch
      %702 = sbr.rel (0) target = $region61
    $region60: #{tpu_custom_call.1} parent=1 // pred_region
      %703 = dma.done [#allocation4], 16
    $region61: #{tpu_custom_call.1} parent=1 // pred_fallthru
      _
    %704 = vsyncpa [#allocation4], 1

</llo_original>
